<compile_context>
chip_gen: v5e
topology: v5e:2x2
jax: 0.10.0
libtpu: 0.0.40
codegen_flags: <defaults>
</compile_context>

<pallas_src>
import functools

import jax
import jax.numpy as jnp
from jax.experimental import pallas as pl
from jax.experimental.pallas import tpu as pltpu


def _round_up(n, m):
    return ((n + m - 1) // m) * m


def _dqn_kernel(x_ref, w1_ref, b1_ref, w2_ref, b2_ref, out_ref):
    # Cast x to bf16 on the VPU (kernel reads f32 from HBM -> 4 B/elem, not 8).
    x = x_ref[...].astype(jnp.bfloat16)
    # fc1: (TB, S)bf16 @ (S, H)bf16 -> f32 accumulate; bias + ReLU on the VPU.
    h = jnp.dot(x, w1_ref[...], preferred_element_type=jnp.float32)
    h = jnp.maximum(h + b1_ref[...], 0.0)
    # fc2: (TB, H)bf16 @ (H, A_pad)bf16 -> f32 accumulate; lane-dense bias add.
    o = jnp.dot(h.astype(jnp.bfloat16), w2_ref[...],
                preferred_element_type=jnp.float32)
    o = o + b2_ref[...]
    # Store only the real A columns (masked vst, but ~32x less HBM writeback
    # than a 128-lane padded f32 output).
    out_ref[...] = o[:, : out_ref.shape[1]].astype(out_ref.dtype)


def prepare_params(w1, b1, w2, b2):
    """One-time prep: bf16 MXU weights, lane-padded w2/b2, 2-D f32 biases.

    w1: (S, H), b1: (H,), w2: (H, A), b2: (A,)  (already stored as x @ W).
    Returns (w1b, b1_2d, w2b_padded, b2_padded, action_dim).
    """
    S, H = w1.shape
    H2, A = w2.shape
    assert H2 == H
    A_pad = _round_up(max(A, 128), 128)
    w1b = w1.astype(jnp.bfloat16)
    w2b = jnp.zeros((H, A_pad), jnp.bfloat16).at[:, :A].set(w2.astype(jnp.bfloat16))
    b1_2d = b1.reshape(1, H).astype(jnp.float32)
    b2p = jnp.zeros((1, A_pad), jnp.float32).at[0, :A].set(b2.astype(jnp.float32))
    return w1b, b1_2d, w2b, b2p, A


@functools.partial(jax.jit, static_argnames=("action_dim", "block_b"))
def dqn_forward(x, w1b, b1_2d, w2b, b2p, *, action_dim, block_b=1024):
    """x: (B, S) f32; prepped params from prepare_params -> (B, action_dim) f32."""
    B, S = x.shape
    S_w, H = w1b.shape
    H_w, A_pad = w2b.shape
    A = action_dim

    # Batch tile: multiple of 16 (bf16 sublane packing), padding bounded by
    # picking the tile count first; >=2 steps for larger B so the "parallel"
    # grid axis can split across both TensorCores on v7x.
    n_tiles = pl.cdiv(B, block_b)
    if n_tiles == 1 and B >= 32:
        n_tiles = 2
    TB = _round_up(pl.cdiv(B, n_tiles), 16)
    B_pad = _round_up(B, TB)
    if B_pad != B:
        x = jnp.pad(x, ((0, B_pad - B), (0, 0)))

    grid = (B_pad // TB,)

    cost = pl.CostEstimate(
        flops=2 * B_pad * (S * H + H * A_pad),
        bytes_accessed=(B_pad * S * 4          # x (f32 read)
                        + S * H * 2 + H * A_pad * 2   # weights (bf16)
                        + (H + A_pad) * 4      # biases (f32)
                        + B_pad * A * 4),      # output (f32, unpadded columns)
        transcendentals=0,
    )

    out = pl.pallas_call(
        _dqn_kernel,
        out_shape=jax.ShapeDtypeStruct((B_pad, A), jnp.float32),
        grid=grid,
        in_specs=[
            pl.BlockSpec((TB, S), lambda i: (i, 0)),      # x: tiled over batch
            pl.BlockSpec((S, H), lambda i: (0, 0)),       # w1: VMEM-resident
            pl.BlockSpec((1, H), lambda i: (0, 0)),       # b1: VMEM-resident
            pl.BlockSpec((H, A_pad), lambda i: (0, 0)),   # w2: VMEM-resident
            pl.BlockSpec((1, A_pad), lambda i: (0, 0)),   # b2: VMEM-resident
        ],
        out_specs=pl.BlockSpec((TB, A), lambda i: (i, 0)),
        compiler_params=pltpu.CompilerParams(
            dimension_semantics=("parallel",),  # megacore on v7x; no-op elsewhere
            vmem_limit_bytes=32 << 20,          # safe on v5e/v6e/v7x
        ),
        cost_estimate=cost,
    )(x, w1b, b1_2d, w2b, b2p)

    return out[:B] if B_pad != B else out


def init_params(key, state_dim, action_dim, hidden_dim):
    """nn.Linear-style U(-1/sqrt(fan_in), 1/sqrt(fan_in)) init.

    Weights stored as (in_features, out_features) — PyTorch weight.T — so the
    kernel computes x @ W directly.
    """
    k1, k2, k3, k4 = jax.random.split(key, 4)
    s1 = 1.0 / jnp.sqrt(state_dim)
    s2 = 1.0 / jnp.sqrt(hidden_dim)
    w1 = jax.random.uniform(k1, (state_dim, hidden_dim), jnp.float32, -s1, s1)
    b1 = jax.random.uniform(k2, (hidden_dim,), jnp.float32, -s1, s1)
    w2 = jax.random.uniform(k3, (hidden_dim, action_dim), jnp.float32, -s2, s2)
    b2 = jax.random.uniform(k4, (action_dim,), jnp.float32, -s2, s2)
    return w1, b1, w2, b2


if __name__ == "__main__":
    # Small shapes consistent with the module: x is (batch, state_dim).
    batch, state_dim, action_dim, hidden_dim = 2, 16, 4, 32

    key = jax.random.PRNGKey(0)
    kx, kp = jax.random.split(key)
    x = jax.random.normal(kx, (batch, state_dim), jnp.float32)
    w1, b1, w2, b2 = init_params(kp, state_dim, action_dim, hidden_dim)

    # One-time parameter preparation (hoisted out of the forward path).
    w1b, b1_2d, w2b, b2p, A = prepare_params(w1, b1, w2, b2)

    out = dqn_forward(x, w1b, b1_2d, w2b, b2p, action_dim=A)
    out = jax.block_until_ready(out)
    assert out.shape == (batch, action_dim)

    # Pure-JAX reference at matching precision (bf16 operands, f32 accumulate).
    f32 = jnp.float32
    xb = x.astype(jnp.bfloat16).astype(f32)
    w1r = w1.astype(jnp.bfloat16).astype(f32)
    w2r = w2.astype(jnp.bfloat16).astype(f32)
    h_ref = jnp.maximum(xb @ w1r + b1, 0.0)
    ref = h_ref.astype(jnp.bfloat16).astype(f32) @ w2r + b2
    assert jnp.allclose(out, ref, atol=1e-2, rtol=1e-2), (
        float(jnp.max(jnp.abs(out - ref))))

    print("KERNEL_OK")
</pallas_src>

<mosaic_0001>
module attributes {stable_mosaic.version = 11 : i64} {
  func.func @_dqn_kernel(%arg0: i32, %arg1: memref<16x16xf32, #tpu.memory_space<vmem>>, %arg2: memref<16x32xbf16, #tpu.memory_space<vmem>>, %arg3: memref<1x32xf32, #tpu.memory_space<vmem>>, %arg4: memref<32x128xbf16, #tpu.memory_space<vmem>>, %arg5: memref<1x128xf32, #tpu.memory_space<vmem>>, %arg6: memref<16x4xf32, #tpu.memory_space<vmem>>) attributes {dimension_semantics = [#tpu.dimension_semantics<parallel>], iteration_bounds = array<i64: 1>, scalar_prefetch = 0 : i64, scratch_operands = 0 : i64, tpu.core_type = #tpu.core_type<tc>, window_params = [{transform_indices = @transform_0, window_bounds = array<i64: 16, 16>}, {pipeline_mode = #tpu.pipeline_mode<synchronous>, transform_indices = @transform_1, window_bounds = array<i64: 16, 32>}, {pipeline_mode = #tpu.pipeline_mode<synchronous>, transform_indices = @transform_2, window_bounds = array<i64: 1, 32>}, {pipeline_mode = #tpu.pipeline_mode<synchronous>, transform_indices = @transform_3, window_bounds = array<i64: 32, 128>}, {pipeline_mode = #tpu.pipeline_mode<synchronous>, transform_indices = @transform_4, window_bounds = array<i64: 1, 128>}, {transform_indices = @transform_5, window_bounds = array<i64: 16, 4>}]} {
    %c0 = arith.constant 0 : index
    %c0_0 = arith.constant 0 : index
    %0 = vector.load %arg1[%c0, %c0_0] : memref<16x16xf32, #tpu.memory_space<vmem>>, vector<16x16xf32>
    %1 = arith.truncf %0 : vector<16x16xf32> to vector<16x16xbf16>
    %c0_1 = arith.constant 0 : index
    %c0_2 = arith.constant 0 : index
    %2 = vector.load %arg2[%c0_1, %c0_2] : memref<16x32xbf16, #tpu.memory_space<vmem>>, vector<16x32xbf16>
    %cst = arith.constant dense<0.000000e+00> : vector<16x32xf32>
    %3 = tpu.matmul %1, %2, %cst {dimension_numbers = #tpu.dot_dimension_numbers<[1], [0], [0], [1], [0, 0, 1, 1], [], []>} : vector<16x16xbf16>, vector<16x32xbf16>, vector<16x32xf32> -> vector<16x32xf32>
    %c0_3 = arith.constant 0 : index
    %c0_4 = arith.constant 0 : index
    %4 = vector.load %arg3[%c0_3, %c0_4] : memref<1x32xf32, #tpu.memory_space<vmem>>, vector<1x32xf32>
    %5 = vector.broadcast %4 : vector<1x32xf32> to vector<16x32xf32>
    %6 = arith.addf %3, %5 : vector<16x32xf32>
    %cst_5 = arith.constant 0.000000e+00 : f32
    %7 = vector.broadcast %cst_5 : f32 to vector<16x32xf32>
    %8 = arith.maximumf %6, %7 : vector<16x32xf32>
    %9 = arith.truncf %8 : vector<16x32xf32> to vector<16x32xbf16>
    %c0_6 = arith.constant 0 : index
    %c0_7 = arith.constant 0 : index
    %10 = vector.load %arg4[%c0_6, %c0_7] : memref<32x128xbf16, #tpu.memory_space<vmem>>, vector<32x128xbf16>
    %cst_8 = arith.constant dense<0.000000e+00> : vector<16x128xf32>
    %11 = tpu.matmul %9, %10, %cst_8 {dimension_numbers = #tpu.dot_dimension_numbers<[1], [0], [0], [1], [0, 0, 1, 1], [], []>} : vector<16x32xbf16>, vector<32x128xbf16>, vector<16x128xf32> -> vector<16x128xf32>
    %c0_9 = arith.constant 0 : index
    %c0_10 = arith.constant 0 : index
    %12 = vector.load %arg5[%c0_9, %c0_10] : memref<1x128xf32, #tpu.memory_space<vmem>>, vector<1x128xf32>
    %13 = vector.broadcast %12 : vector<1x128xf32> to vector<16x128xf32>
    %14 = arith.addf %11, %13 : vector<16x128xf32>
    %15 = vector.extract_strided_slice %14 {offsets = [0, 0], sizes = [16, 4], strides = [1, 1]} : vector<16x128xf32> to vector<16x4xf32>
    %c0_11 = arith.constant 0 : index
    %c0_12 = arith.constant 0 : index
    %16 = vector.load %arg6[%c0_11, %c0_12] : memref<16x4xf32, #tpu.memory_space<vmem>>, vector<16x4xf32>
    tpu.vector_store %arg6[%c0_11, %c0_12], %15 {strides = array<i32>} : memref<16x4xf32, #tpu.memory_space<vmem>>, vector<16x4xf32>,
    return
  }
  func.func @transform_0(%arg0: i32) -> (i32, i32) {
    %c0_i32 = arith.constant 0 : i32
    %c0_i32_0 = arith.constant 0 : i32
    return %arg0, %c0_i32 : i32, i32
  }
  func.func @transform_1(%arg0: i32) -> (i32, i32) {
    %c0_i32 = arith.constant 0 : i32
    %c0_i32_0 = arith.constant 0 : i32
    %c0_i32_1 = arith.constant 0 : i32
    return %c0_i32, %c0_i32_0 : i32, i32
  }
  func.func @transform_2(%arg0: i32) -> (i32, i32) {
    %c0_i32 = arith.constant 0 : i32
    %c0_i32_0 = arith.constant 0 : i32
    %c0_i32_1 = arith.constant 0 : i32
    return %c0_i32, %c0_i32_0 : i32, i32
  }
  func.func @transform_3(%arg0: i32) -> (i32, i32) {
    %c0_i32 = arith.constant 0 : i32
    %c0_i32_0 = arith.constant 0 : i32
    %c0_i32_1 = arith.constant 0 : i32
    return %c0_i32, %c0_i32_0 : i32, i32
  }
  func.func @transform_4(%arg0: i32) -> (i32, i32) {
    %c0_i32 = arith.constant 0 : i32
    %c0_i32_0 = arith.constant 0 : i32
    %c0_i32_1 = arith.constant 0 : i32
    return %c0_i32, %c0_i32_0 : i32, i32
  }
  func.func @transform_5(%arg0: i32) -> (i32, i32) {
    %c0_i32 = arith.constant 0 : i32
    %c0_i32_0 = arith.constant 0 : i32
    return %arg0, %c0_i32 : i32, i32
  }
}

</mosaic_0001>

<llo_original>
// kernel: dqn_forward.1
$region0: #{dqn_forward.1}
  #allocation0 [shape = 'u32[]', space=smem, size = 0x4, offset = 0x4, fixed_abs, tag = 'smem constant byte address 0x4 - core index']
  #allocation1 [shape = 'u32[72,128]{1,0:T(1,128)}', space=vmem, size = 0x9000, scoped, tag = 'internal scratch']
  %s0 = inlined_call_operand.vmem [shape: f32[16,16], index: 0, kind: input, shape index: {}]
  %s1 = inlined_call_operand.hbm [shape: bf16[16,32], index: 1, kind: input, shape index: {}]
  %s2 = inlined_call_operand.vmem [shape: f32[1,32], index: 2, kind: input, shape index: {}]
  %s3 = inlined_call_operand.vmem [shape: bf16[32,128], index: 3, kind: input, shape index: {}]
  %s4 = inlined_call_operand.vmem [shape: f32[1,128], index: 4, kind: input, shape index: {}]
  %s5 = inlined_call_operand.vmem [shape: f32[16,4], index: 5, kind: output, shape index: {}]
  %s6 = sld [smem:[#allocation0]]
  $region34: #{dqn_forward.1} parent=0
    _
  %s8 = ssub.s32 1, %s6
  %s9 = scalar_select 0, %s8, %s6
  $region1: #{dqn_forward.1} parent=0
    #allocation2 [shape = 'u8[4096]{0}', space=vmem, size = 0x1000, scoped, tag = 'input window, operand 1, single buffered']
    #allocation3 [shape = 's32[1]{0}', space=sflag, size = 0x4, scoped, tag = 'scoped memory for dqn_forward.1']
    %10 = vsyncpa [#allocation3], 0
    // Predicated region
    $region2: #{dqn_forward.1} parent=1 // pred_check
      _
    $region3: #{dqn_forward.1} parent=1 // pred_check_branch
      %12 = sbr.rel (0) target = $region5
    $region4: #{dqn_forward.1} parent=1 // pred_region
      _
    $region5: #{dqn_forward.1} parent=1 // pred_fallthru
      _
    // Predicated region
    $region6: #{dqn_forward.1} parent=1 // pred_check
      _
    $region7: #{dqn_forward.1} parent=1 // pred_check_branch
      %14 = sbr.rel (0) target = $region9
    $region8: #{dqn_forward.1} parent=1 // pred_region
      %16 = vsyncadd [#allocation3], 0
      %s17 = sshll.u32 %s1, 4
      %s18 = int_to_ptr.hbm [resolvable:$true] %s17
      %s19 = sshll.u32 [#allocation2], 4
      %s20 = int_to_ptr.vmem [resolvable:$true] %s19
      %25 = dma.hbm_to_vmem [thread:$0]  %s18, 128, %s20, [#allocation3], 64, 64, 4
    $region9: #{dqn_forward.1} parent=1 // pred_fallthru
      _
    // Predicated region
    $region10: #{dqn_forward.1} parent=1 // pred_check
      _
    $region11: #{dqn_forward.1} parent=1 // pred_check_branch
      %27 = sbr.rel (0) target = $region13
    $region12: #{dqn_forward.1} parent=1 // pred_region
      _
    $region13: #{dqn_forward.1} parent=1 // pred_fallthru
      _
    // Predicated region
    $region14: #{dqn_forward.1} parent=1 // pred_check
      _
    $region15: #{dqn_forward.1} parent=1 // pred_check_branch
      %29 = sbr.rel (0) target = $region17
    $region16: #{dqn_forward.1} parent=1 // pred_region
      _
    $region17: #{dqn_forward.1} parent=1 // pred_fallthru
      _
    // Predicated region
    $region18: #{dqn_forward.1} parent=1 // pred_check
      _
    $region19: #{dqn_forward.1} parent=1 // pred_check_branch
      %31 = sbr.rel (0) target = $region21
    $region20: #{dqn_forward.1} parent=1 // pred_region
      _
    $region21: #{dqn_forward.1} parent=1 // pred_fallthru
      _
    // Predicated region
    $region22: #{dqn_forward.1} parent=1 // pred_check
      _
    $region23: #{dqn_forward.1} parent=1 // pred_check_branch
      %33 = sbr.rel (0) target = $region25
    $region24: #{dqn_forward.1} parent=1 // pred_region
      %35 = dma.done [#allocation3], 128
    $region25: #{dqn_forward.1} parent=1 // pred_fallthru
      _
    %v37 = vld [vmem:[%s0] sm:$0xff]
    %v38 = vld [vmem:[%s0 + $0x8] sm:$0xff]
    %v39 = vpack.c.bf16 %v38, %v37
    %v40 = vld [vmem:[#allocation2] sm:$0xf]
    %v41 = vld [vmem:[#allocation2 + $0x4] sm:$0xf]
    %v42 = vld [vmem:[%s2] sm:$0x1]
    %v44 = vperm.slane %v42, 0
    %v48 = vunpack.c.l.b16 %v40
    %v49 = vunpack.c.l.b16 %v41
    %v50 = vpack.c.b16 %v49, %v48
    %vm52 = vcmask 130048
    %v54 = vsel %vm52, %v39, 0
    %56 = vmatpush.bf16.msra.mxu0 0
    %57 = vmatpush.bf16.msra.mxu0 0
    %58 = vmatpush.bf16.msra.mxu0 0
    %59 = vmatpush.bf16.msra.mxu0 0
    %60 = vmatpush.bf16.msra.mxu0 0
    %61 = vmatpush.bf16.msra.mxu0 0
    %62 = vmatpush.bf16.msra.mxu0 0
    %63 = vmatpush.bf16.msra.mxu0 %v50
    %64 = vmatmul.bf16.gmra.mxu0 %v54
    %v65 = vpop.f32.mrf.mxu0
    %v66 = vadd.f32 %v44, %v65
    %v67 = vpop.f32.mrf.mxu0
    %v68 = vadd.f32 %v44, %v67
    %69 = vdwg.mxu0
    %v70 = vmax.f32 %v66, 0.0
    %v71 = vmax.f32 %v68, 0.0
    %v72 = vpack.c.bf16 %v71, %v70
    %v73 = vld [vmem:[%s3] sm:$0xf]
    %v74 = vld [vmem:[%s3 + $0x4] sm:$0xf]
    %v75 = vld [vmem:[%s3 + $0x8] sm:$0xf]
    %v76 = vld [vmem:[%s3 + $0xc] sm:$0xf]
    %v77 = vld [vmem:[%s4] sm:$0x1]
    %v79 = vperm.slane %v77, 0
    %v85 = vunpack.c.l.b16 %v73
    %v86 = vunpack.c.l.b16 %v74
    %v87 = vunpack.c.l.b16 %v75
    %v88 = vunpack.c.l.b16 %v76
    %v89 = vpack.c.b16 %v86, %v85
    %v90 = vpack.c.b16 %v88, %v87
    %vm93 = vcmask 261120
    %v95 = vsel %vm93, %v72, 0
    %97 = vmatpush.bf16.msra.mxu0 0
    %98 = vmatpush.bf16.msra.mxu0 0
    %99 = vmatpush.bf16.msra.mxu0 0
    %100 = vmatpush.bf16.msra.mxu0 0
    %101 = vmatpush.bf16.msra.mxu0 0
    %102 = vmatpush.bf16.msra.mxu0 0
    %103 = vmatpush.bf16.msra.mxu0 %v90
    %104 = vmatpush.bf16.msra.mxu0 %v89
    %105 = vmatmul.bf16.gmra.mxu0 %v95
    %v106 = vpop.f32.mrf.mxu0
    %v107 = vadd.f32 %v79, %v106
    %v108 = vpop.f32.mrf.mxu0
    %v109 = vadd.f32 %v79, %v108
    %110 = vdwg.mxu0
    %vm111 = vcmask 31744
    %112 = vst.msk [vmem:[%s5] sm:$0xff] %vm111, %v107
    %113 = vst.msk [vmem:[%s5 + $0x8] sm:$0xff] %vm111, %v109
    // Predicated region
    $region26: #{dqn_forward.1} parent=1 // pred_check
      _
    $region27: #{dqn_forward.1} parent=1 // pred_check_branch
      %115 = sbr.rel (0) target = $region29
    $region28: #{dqn_forward.1} parent=1 // pred_region
      _
    $region29: #{dqn_forward.1} parent=1 // pred_fallthru
      _
    // Predicated region
    $region30: #{dqn_forward.1} parent=1 // pred_check
      _
    $region31: #{dqn_forward.1} parent=1 // pred_check_branch
      %117 = sbr.rel (0) target = $region33
    $region32: #{dqn_forward.1} parent=1 // pred_region
      _
    $region33: #{dqn_forward.1} parent=1 // pred_fallthru
      _
    %118 = vsyncpa [#allocation3], 1

</llo_original>
